<compile_context>
chip_gen: v5e
topology: v5e:2x2
jax: 0.10.0
libtpu: 0.0.40
codegen_flags: <defaults>
</compile_context>

<pallas_src>
import jax
import jax.numpy as jnp
from jax.experimental import pallas as pl
from jax.experimental.pallas import tpu as pltpu


def _pick_batch_tile(batch, seq_len, p, hidden_dim):
    """Largest divisor of `batch` that (a) leaves >= 2 grid steps when batch>=2
    (dual-TC sharding on v7x), (b) keeps <= ~2048 token rows per step, and
    (c) keeps the f32 output tile under ~2 MiB (VMEM-safe on all generations)."""
    if batch <= 1:
        return 1
    rows_cap = max(1, 2048 // max(seq_len, 1))
    vmem_cap = max(1, (2 << 20) // max(p * hidden_dim * 4, 1))
    cap = max(1, min(batch // 2, rows_cap, vmem_cap))
    for tb in range(cap, 0, -1):
        if batch % tb == 0:
            return tb
    return 1


def _make_kernel(tb, seq_len, input_dim, hidden_dim, extra):
    """Kernel closure over static tile sizes."""

    def kernel(x_ref, w_ref, b_ref, mod_ref, *rest):
        if extra > 0:
            it_ref, o_ref = rest
        else:
            (o_ref,) = rest

        x = x_ref[...]                       # (tb, S, K), original dtype
        w = w_ref[...]                       # (K, H), original dtype

        if seq_len % 8 == 0 or tb == 1:
            # Layout-free collapse of (tb, S) -> rows (S is sublane-aligned or
            # tb == 1, so the reshape is a pure view): single 2-D MXU matmul.
            y = jnp.dot(x.reshape(tb * seq_len, input_dim), w,
                        preferred_element_type=jnp.float32)
            y = y.reshape(tb, seq_len, hidden_dim)
        else:
            # Fallback for unaligned seq_len: batched matmul (flash-style
            # einsum is a supported MXU pattern, avoids a relayouting reshape).
            wb = jnp.broadcast_to(w[None], (tb,) + w.shape)
            y = jnp.einsum("bsk,bkh->bsh", x, wb,
                           preferred_element_type=jnp.float32)

        # bias then modulation, both f32, broadcast over the batch-tile dim.
        y = (y + b_ref[...][None]) * mod_ref[...][None]

        if extra > 0:
            o_ref[:, :seq_len, :] = y.astype(o_ref.dtype)
            it = it_ref[...].astype(o_ref.dtype)          # (extra, H)
            o_ref[:, seq_len:, :] = jnp.broadcast_to(
                it[None], (tb, extra, hidden_dim))
        else:
            o_ref[...] = y.astype(o_ref.dtype)

    return kernel


def extended_mapping_a(x, weight, bias, modulation, interp_tokens):
    """x: (B, S, Din); weight: (Din, H); bias: (H,); modulation: (S, H);
    interp_tokens: (P-S, H).  Returns (B, P, H) = cat([x@W+b)*mod, interp])."""
    batch, seq_len, input_dim = x.shape
    hidden_dim = weight.shape[1]
    extra = interp_tokens.shape[0]
    p_total = seq_len + extra
    out_dtype = x.dtype

    tb = _pick_batch_tile(batch, seq_len, p_total, hidden_dim)
    grid_b = batch // tb

    # Tiny parameters: promote to f32 once (cheap), keep x / weight as-is.
    bias2 = bias.astype(jnp.float32).reshape(1, hidden_dim)
    mod2 = modulation.astype(jnp.float32)

    in_specs = [
        # x: one batch-tile per grid step, full (S, K) in the last two dims.
        pl.BlockSpec((tb, seq_len, input_dim), lambda b: (b, 0, 0)),
        # weight / bias / modulation: constant index map -> resident in VMEM.
        pl.BlockSpec((input_dim, hidden_dim), lambda b: (0, 0)),
        pl.BlockSpec((1, hidden_dim), lambda b: (0, 0)),
        pl.BlockSpec((seq_len, hidden_dim), lambda b: (0, 0)),
    ]
    args = [x, weight, bias2, mod2]
    if extra > 0:
        in_specs.append(pl.BlockSpec((extra, hidden_dim), lambda b: (0, 0)))
        args.append(interp_tokens)

    kernel = _make_kernel(tb, seq_len, input_dim, hidden_dim, extra)

    return pl.pallas_call(
        kernel,
        out_shape=jax.ShapeDtypeStruct((batch, p_total, hidden_dim), out_dtype),
        grid_spec=pltpu.PrefetchScalarGridSpec(
            num_scalar_prefetch=0,
            grid=(grid_b,),
            in_specs=in_specs,
            # Final output written directly: (tb, P, H) per step.
            out_specs=pl.BlockSpec((tb, p_total, hidden_dim),
                                   lambda b: (b, 0, 0)),
        ),
        compiler_params=pltpu.CompilerParams(
            dimension_semantics=("parallel",)),
    )(*args)


def _reference(x, weight, bias, modulation, interp_tokens):
    batch = x.shape[0]
    token_repr = jnp.einsum("bsd,dh->bsh", x, weight,
                            precision="highest") + bias
    token_repr = token_repr * modulation[None, :, :]
    if interp_tokens.shape[0] == 0:
        return token_repr
    interp_repr = jnp.broadcast_to(interp_tokens[None, :, :],
                                   (batch,) + interp_tokens.shape)
    return jnp.concatenate([token_repr, interp_repr], axis=1)


if __name__ == "__main__":
    # Small shapes consistent with the module's forward.
    batch = 2
    input_dim = 10
    hidden_dim = 32
    seq_len = 8
    p = 12
    extra = p - seq_len

    key = jax.random.PRNGKey(0)
    kx, kw, kb, km = jax.random.split(key, 4)

    x = jax.random.normal(kx, (batch, seq_len, input_dim), dtype=jnp.float32)

    # Parameters matching the module's shapes (modulation made non-trivial so
    # the fused multiply is actually exercised; module init is ones).
    weight = jax.random.normal(kw, (input_dim, hidden_dim), dtype=jnp.float32) * 0.1
    bias = jax.random.normal(kb, (hidden_dim,), dtype=jnp.float32) * 0.1
    modulation = 1.0 + 0.1 * jax.random.normal(km, (seq_len, hidden_dim),
                                               dtype=jnp.float32)
    interp_tokens = jnp.broadcast_to(
        jnp.linspace(-1.0, 1.0, extra, dtype=jnp.float32)[:, None],
        (extra, hidden_dim))

    fn = jax.jit(extended_mapping_a)
    out = fn(x, weight, bias, modulation, interp_tokens)
    out = jax.block_until_ready(out)

    ref = _reference(x, weight, bias, modulation, interp_tokens)
    assert out.shape == (batch, p, hidden_dim)
    # Tolerance accommodates MXU f32 matmul precision vs. highest-precision ref.
    assert jnp.allclose(out, ref, atol=2e-2, rtol=2e-2), (
        float(jnp.max(jnp.abs(out - ref))))

    print("KERNEL_OK")
</pallas_src>

<mosaic_0001>
module attributes {stable_mosaic.version = 11 : i64} {
  func.func @kernel(%arg0: i32, %arg1: memref<1x8x10xf32, #tpu.memory_space<vmem>>, %arg2: memref<10x32xf32, #tpu.memory_space<vmem>>, %arg3: memref<1x32xf32, #tpu.memory_space<vmem>>, %arg4: memref<8x32xf32, #tpu.memory_space<vmem>>, %arg5: memref<4x32xf32, #tpu.memory_space<vmem>>, %arg6: memref<1x12x32xf32, #tpu.memory_space<vmem>>) attributes {dimension_semantics = [#tpu.dimension_semantics<parallel>], iteration_bounds = array<i64: 2>, scalar_prefetch = 0 : i64, scratch_operands = 0 : i64, tpu.core_type = #tpu.core_type<tc>, window_params = [{transform_indices = @transform_0, window_bounds = array<i64: 1, 8, 10>}, {pipeline_mode = #tpu.pipeline_mode<synchronous>, transform_indices = @transform_1, window_bounds = array<i64: 10, 32>}, {pipeline_mode = #tpu.pipeline_mode<synchronous>, transform_indices = @transform_2, window_bounds = array<i64: 1, 32>}, {pipeline_mode = #tpu.pipeline_mode<synchronous>, transform_indices = @transform_3, window_bounds = array<i64: 8, 32>}, {pipeline_mode = #tpu.pipeline_mode<synchronous>, transform_indices = @transform_4, window_bounds = array<i64: 4, 32>}, {transform_indices = @transform_5, window_bounds = array<i64: 1, 12, 32>}]} {
    %c0 = arith.constant 0 : index
    %c0_0 = arith.constant 0 : index
    %c0_1 = arith.constant 0 : index
    %0 = vector.load %arg1[%c0, %c0_0, %c0_1] : memref<1x8x10xf32, #tpu.memory_space<vmem>>, vector<1x8x10xf32>
    %c0_2 = arith.constant 0 : index
    %c0_3 = arith.constant 0 : index
    %1 = vector.load %arg2[%c0_2, %c0_3] : memref<10x32xf32, #tpu.memory_space<vmem>>, vector<10x32xf32>
    %2 = vector.shape_cast %0 : vector<1x8x10xf32> to vector<8x10xf32>
    %cst = arith.constant dense<0.000000e+00> : vector<8x32xf32>
    %3 = tpu.matmul %2, %1, %cst {dimension_numbers = #tpu.dot_dimension_numbers<[1], [0], [0], [1], [0, 0, 1, 1], [], []>} : vector<8x10xf32>, vector<10x32xf32>, vector<8x32xf32> -> vector<8x32xf32>
    %4 = vector.shape_cast %3 : vector<8x32xf32> to vector<1x8x32xf32>
    %c0_4 = arith.constant 0 : index
    %c0_5 = arith.constant 0 : index
    %5 = vector.load %arg3[%c0_4, %c0_5] : memref<1x32xf32, #tpu.memory_space<vmem>>, vector<1x32xf32>
    %6 = vector.shape_cast %5 : vector<1x32xf32> to vector<1x1x32xf32>
    %7 = vector.broadcast %6 : vector<1x1x32xf32> to vector<1x8x32xf32>
    %8 = arith.addf %4, %7 : vector<1x8x32xf32>
    %c0_6 = arith.constant 0 : index
    %c0_7 = arith.constant 0 : index
    %9 = vector.load %arg4[%c0_6, %c0_7] : memref<8x32xf32, #tpu.memory_space<vmem>>, vector<8x32xf32>
    %10 = vector.shape_cast %9 : vector<8x32xf32> to vector<1x8x32xf32>
    %11 = arith.mulf %8, %10 : vector<1x8x32xf32>
    %c0_8 = arith.constant 0 : index
    %c0_9 = arith.constant 0 : index
    %c0_10 = arith.constant 0 : index
    %12 = vector.load %arg6[%c0_8, %c0_9, %c0_10] : memref<1x12x32xf32, #tpu.memory_space<vmem>>, vector<1x8x32xf32>
    tpu.vector_store %arg6[%c0_8, %c0_9, %c0_10], %11 {strides = array<i32>} : memref<1x12x32xf32, #tpu.memory_space<vmem>>, vector<1x8x32xf32>,
    %c0_11 = arith.constant 0 : index
    %c0_12 = arith.constant 0 : index
    %13 = vector.load %arg5[%c0_11, %c0_12] : memref<4x32xf32, #tpu.memory_space<vmem>>, vector<4x32xf32>
    %14 = vector.shape_cast %13 : vector<4x32xf32> to vector<1x4x32xf32>
    %c0_13 = arith.constant 0 : index
    %c8 = arith.constant 8 : index
    %c0_14 = arith.constant 0 : index
    %15 = vector.load %arg6[%c0_13, %c8, %c0_14] : memref<1x12x32xf32, #tpu.memory_space<vmem>>, vector<1x4x32xf32>
    tpu.vector_store %arg6[%c0_13, %c8, %c0_14], %14 {strides = array<i32>} : memref<1x12x32xf32, #tpu.memory_space<vmem>>, vector<1x4x32xf32>,
    return
  }
  func.func @transform_0(%arg0: i32) -> (i32, i32, i32) {
    %c0_i32 = arith.constant 0 : i32
    %c0_i32_0 = arith.constant 0 : i32
    %c0_i32_1 = arith.constant 0 : i32
    return %arg0, %c0_i32, %c0_i32_0 : i32, i32, i32
  }
  func.func @transform_1(%arg0: i32) -> (i32, i32) {
    %c0_i32 = arith.constant 0 : i32
    %c0_i32_0 = arith.constant 0 : i32
    %c0_i32_1 = arith.constant 0 : i32
    return %c0_i32, %c0_i32_0 : i32, i32
  }
  func.func @transform_2(%arg0: i32) -> (i32, i32) {
    %c0_i32 = arith.constant 0 : i32
    %c0_i32_0 = arith.constant 0 : i32
    %c0_i32_1 = arith.constant 0 : i32
    return %c0_i32, %c0_i32_0 : i32, i32
  }
  func.func @transform_3(%arg0: i32) -> (i32, i32) {
    %c0_i32 = arith.constant 0 : i32
    %c0_i32_0 = arith.constant 0 : i32
    %c0_i32_1 = arith.constant 0 : i32
    return %c0_i32, %c0_i32_0 : i32, i32
  }
  func.func @transform_4(%arg0: i32) -> (i32, i32) {
    %c0_i32 = arith.constant 0 : i32
    %c0_i32_0 = arith.constant 0 : i32
    %c0_i32_1 = arith.constant 0 : i32
    return %c0_i32, %c0_i32_0 : i32, i32
  }
  func.func @transform_5(%arg0: i32) -> (i32, i32, i32) {
    %c0_i32 = arith.constant 0 : i32
    %c0_i32_0 = arith.constant 0 : i32
    %c0_i32_1 = arith.constant 0 : i32
    return %arg0, %c0_i32, %c0_i32_0 : i32, i32, i32
  }
}

</mosaic_0001>

<llo_original>
// kernel: extended_mapping_a.1
$region0: #{extended_mapping_a.1}
  #allocation0 [shape = 'u32[]', space=smem, size = 0x4, offset = 0x4, fixed_abs, tag = 'smem constant byte address 0x4 - core index']
  #allocation1 [shape = 'u32[72,128]{1,0:T(1,128)}', space=vmem, size = 0x9000, scoped, tag = 'internal scratch']
  %s0 = inlined_call_operand.hbm [shape: f32[2,8,10], index: 0, kind: input, shape index: {}]
  %s1 = inlined_call_operand.hbm [shape: f32[10,32], index: 1, kind: input, shape index: {}]
  %s2 = inlined_call_operand.hbm [shape: f32[1,32], index: 2, kind: input, shape index: {}]
  %s3 = inlined_call_operand.hbm [shape: f32[8,32], index: 3, kind: input, shape index: {}]
  %s4 = inlined_call_operand.vmem [shape: f32[4,32], index: 4, kind: input, shape index: {}]
  %s5 = inlined_call_operand.vmem [shape: f32[2,12,32], index: 5, kind: output, shape index: {}]
  %s6 = sld [smem:[#allocation0]]
  $region69: #{extended_mapping_a.1} parent=0
    _
  %s8 = ssub.s32 1, %s6
  %s9 = scalar_select 0, %s8, %s6
  $region1: #{extended_mapping_a.1} parent=0
    #allocation2 [shape = 'u8[8192]{0}', space=vmem, size = 0x2000, scoped, tag = 'input window, operand 0']
    #allocation3 [shape = 's32[2]{0}', space=sflag, size = 0x8, scoped, tag = 'scoped memory for extended_mapping_a.1']
    #allocation4 [shape = 'u8[8192]{0}', space=vmem, size = 0x2000, scoped, tag = 'input window, operand 1, single buffered']
    #allocation5 [shape = 's32[1]{0}', space=sflag, size = 0x4, scoped, tag = 'scoped memory for extended_mapping_a.1']
    #allocation6 [shape = 'u8[512]{0}', space=vmem, size = 0x400, scoped, tag = 'input window, operand 2, single buffered']
    #allocation7 [shape = 'u8[4096]{0}', space=vmem, size = 0x1000, scoped, tag = 'input window, operand 3, single buffered']
    #allocation8 [shape = 's32[1]{0}', space=sflag, size = 0x4, scoped, tag = 'scoped memory for extended_mapping_a.1']
    %10 = vsyncpa [#allocation3], 0
    %s11 = scalar_lea.sflag [#allocation3], 1
    %12 = vsyncpa %s11, 0
    %13 = vsyncpa [#allocation5], 0
    %14 = vsyncpa [#allocation8], 0
    loop: start=0, step=1, limit=4
    $region2: #{extended_mapping_a.1} parent=1 // loop_pre_header
      _
    $region3: #{extended_mapping_a.1} parent=1 // loop_header
      %s16 = sphi 0, %s20
      %p17 = scmp.ge.s32.totalorder %s16, 4
      %s26 = sphi 0, %s28
      %s29 = sphi 0, %s26
      %s30 = sphi 0, %s29
      %s46 = sphi 0, %s30
      %s50 = sphi 0, %s50
      %s52 = sphi 0, %s50
      %s53 = sphi 0, %s52
      %s67 = sphi 0, %s53
      %s71 = sphi 0, %s71
      %s73 = sphi 0, %s71
      %s74 = sphi 0, %s73
      %s88 = sphi 0, %s74
      %s92 = sphi 0, %s92
      %s94 = sphi 0, %s92
      %s95 = sphi 0, %s94
      %s109 = sphi 0, %s95
      %s113 = sphi 0, %s113
      %s115 = sphi 0, %s113
      %s116 = sphi 0, %s115
      %s130 = sphi 0, %s116
      %s136 = sphi 0, %s138
      %s139 = sphi 0, %s136
      %s140 = sphi 0, %s139
      %s156 = sphi 0, %s140
    $region4: #{extended_mapping_a.1} parent=1 // loop_header_branch
      %19 = sbr.rel (%p17) target = $region8
    $region5: #{extended_mapping_a.1} parent=1 // loop_body
      %s21 = ssub.s32 %s16, 1
      %s22 = ssub.s32 %s16, 2
      %s23 = sadd.s32 %s16, 1
      %s24 = ssub.s32 %s16, %s23
      %p25 = scmp.eq.s32.totalorder %s24, 0
      %s27 = sadd.s32 %s26, 1
      %s28 = scalar_select %p25, %s26, %s27
      %p31 = pneg %p25
      %p32 = scmp.eq.s32.totalorder %s16, 1
      %p33 = por %p31, %p32
      %p34 = scmp.ne.s32.totalorder %s26, %s29
      %p35 = scmp.eq.s32.totalorder %s16, 0
      %p36 = por %p34, %p35
      %p37 = scmp.ne.s32.totalorder %s26, %s29
      %p38 = scmp.eq.s32.totalorder %s21, 1
      %p39 = por %p37, %p38
      %p40 = scmp.ne.s32.totalorder %s29, %s30
      %p41 = scmp.eq.s32.totalorder %s21, 0
      %p42 = por %p40, %p41
      %p43 = scmp.ne.s32.totalorder %s29, %s30
      %p44 = scmp.eq.s32.totalorder %s22, 1
      %p45 = por %p43, %p44
      %p47 = scmp.ne.s32.totalorder %s30, %s46
      %p48 = scmp.eq.s32.totalorder %s22, 0
      %p49 = por %p47, %p48
      %s51 = sadd.s32 %s50, 1
      %p54 = scmp.eq.s32.totalorder %s16, 1
      %p55 = scmp.ne.s32.totalorder %s50, %s52
      %p56 = scmp.eq.s32.totalorder %s16, 0
      %p57 = por %p55, %p56
      %p58 = scmp.ne.s32.totalorder %s50, %s52
      %p59 = scmp.eq.s32.totalorder %s21, 1
      %p60 = por %p58, %p59
      %p61 = scmp.ne.s32.totalorder %s52, %s53
      %p62 = scmp.eq.s32.totalorder %s21, 0
      %p63 = por %p61, %p62
      %p64 = scmp.ne.s32.totalorder %s52, %s53
      %p65 = scmp.eq.s32.totalorder %s22, 1
      %p66 = por %p64, %p65
      %p68 = scmp.ne.s32.totalorder %s53, %s67
      %p69 = scmp.eq.s32.totalorder %s22, 0
      %p70 = por %p68, %p69
      %s72 = sadd.s32 %s71, 1
      %p75 = scmp.eq.s32.totalorder %s16, 1
      %p76 = scmp.ne.s32.totalorder %s71, %s73
      %p77 = scmp.eq.s32.totalorder %s16, 0
      %p78 = por %p76, %p77
      %p79 = scmp.ne.s32.totalorder %s71, %s73
      %p80 = scmp.eq.s32.totalorder %s21, 1
      %p81 = por %p79, %p80
      %p82 = scmp.ne.s32.totalorder %s73, %s74
      %p83 = scmp.eq.s32.totalorder %s21, 0
      %p84 = por %p82, %p83
      %p85 = scmp.ne.s32.totalorder %s73, %s74
      %p86 = scmp.eq.s32.totalorder %s22, 1
      %p87 = por %p85, %p86
      %p89 = scmp.ne.s32.totalorder %s74, %s88
      %p90 = scmp.eq.s32.totalorder %s22, 0
      %p91 = por %p89, %p90
      %s93 = sadd.s32 %s92, 1
      %p96 = scmp.eq.s32.totalorder %s16, 1
      %p97 = scmp.ne.s32.totalorder %s92, %s94
      %p98 = scmp.eq.s32.totalorder %s16, 0
      %p99 = por %p97, %p98
      %p100 = scmp.ne.s32.totalorder %s92, %s94
      %p101 = scmp.eq.s32.totalorder %s21, 1
      %p102 = por %p100, %p101
      %p103 = scmp.ne.s32.totalorder %s94, %s95
      %p104 = scmp.eq.s32.totalorder %s21, 0
      %p105 = por %p103, %p104
      %p106 = scmp.ne.s32.totalorder %s94, %s95
      %p107 = scmp.eq.s32.totalorder %s22, 1
      %p108 = por %p106, %p107
      %p110 = scmp.ne.s32.totalorder %s95, %s109
      %p111 = scmp.eq.s32.totalorder %s22, 0
      %p112 = por %p110, %p111
      %s114 = sadd.s32 %s113, 1
      %p117 = scmp.eq.s32.totalorder %s16, 1
      %p118 = scmp.ne.s32.totalorder %s113, %s115
      %p119 = scmp.eq.s32.totalorder %s16, 0
      %p120 = por %p118, %p119
      %p121 = scmp.ne.s32.totalorder %s113, %s115
      %p122 = scmp.eq.s32.totalorder %s21, 1
      %p123 = por %p121, %p122
      %p124 = scmp.ne.s32.totalorder %s115, %s116
      %p125 = scmp.eq.s32.totalorder %s21, 0
      %p126 = por %p124, %p125
      %p127 = scmp.ne.s32.totalorder %s115, %s116
      %p128 = scmp.eq.s32.totalorder %s22, 1
      %p129 = por %p127, %p128
      %p131 = scmp.ne.s32.totalorder %s116, %s130
      %p132 = scmp.eq.s32.totalorder %s22, 0
      %p133 = por %p131, %p132
      %s134 = ssub.s32 %s16, %s23
      %p135 = scmp.eq.s32.totalorder %s134, 0
      %s137 = sadd.s32 %s136, 1
      %s138 = scalar_select %p135, %s136, %s137
      %p141 = pneg %p135
      %p142 = scmp.eq.s32.totalorder %s16, 1
      %p143 = por %p141, %p142
      %p144 = scmp.ne.s32.totalorder %s136, %s139
      %p145 = scmp.eq.s32.totalorder %s16, 0
      %p146 = por %p144, %p145
      %p147 = scmp.ne.s32.totalorder %s136, %s139
      %p148 = scmp.eq.s32.totalorder %s21, 1
      %p149 = por %p147, %p148
      %p150 = scmp.ne.s32.totalorder %s139, %s140
      %p151 = scmp.eq.s32.totalorder %s21, 0
      %p152 = por %p150, %p151
      %p153 = scmp.ne.s32.totalorder %s139, %s140
      %p154 = scmp.eq.s32.totalorder %s22, 1
      %p155 = por %p153, %p154
      %p157 = scmp.ne.s32.totalorder %s140, %s156
      %p158 = scmp.eq.s32.totalorder %s22, 0
      %p159 = por %p157, %p158
      %p160 = scmp.le.s32.totalorder 1, %s16
      %p161 = scmp.lt.s32.totalorder %s16, 3
      %p162 = pnand %p160, %p161
      %p163 = pneg %p162
      // Predicated region
      $region9: #{extended_mapping_a.1} parent=5 // pred_check
        _
      $region10: #{extended_mapping_a.1} parent=5 // pred_check_branch
        %165 = sbr.rel (%p162) target = $region12
      $region11: #{extended_mapping_a.1} parent=5 // pred_region
        %s166 = ssub.s32 %s16, 1
        // Predicated region
        $region13: #{extended_mapping_a.1} parent=11 // pred_check
          %p167 = pneg %p63
        $region14: #{extended_mapping_a.1} parent=11 // pred_check_branch
          %169 = sbr.rel (%p167) target = $region16
        $region15: #{extended_mapping_a.1} parent=11 // pred_region
          %171 = vsyncadd [#allocation5], 0
          %s172 = sshll.u32 %s1, 4
          %s173 = int_to_ptr.hbm [resolvable:$true] %s172
          %s174 = sshll.u32 [#allocation4], 4
          %s175 = int_to_ptr.vmem [resolvable:$true] %s174
          %180 = dma.hbm_to_vmem [thread:$0]  %s173, 256, %s175, [#allocation5], 128, 128, 8
        $region16: #{extended_mapping_a.1} parent=11 // pred_fallthru
          _
        // Predicated region
        $region17: #{extended_mapping_a.1} parent=11 // pred_check
          %p181 = pneg %p84
        $region18: #{extended_mapping_a.1} parent=11 // pred_check_branch
          %183 = sbr.rel (%p181) target = $region20
        $region19: #{extended_mapping_a.1} parent=11 // pred_region
          %185 = vsyncadd [#allocation5], 0
          %s187 = sshll.u32 %s2, 4
          %s188 = int_to_ptr.hbm [resolvable:$true] %s187
          %s189 = sshll.u32 [#allocation6], 4
          %s190 = int_to_ptr.vmem [resolvable:$true] %s189
          %192 = dma.hbm_to_vmem [thread:$0]  %s188, 16, %s190, [#allocation5]
        $region20: #{extended_mapping_a.1} parent=11 // pred_fallthru
          _
        // Predicated region
        $region21: #{extended_mapping_a.1} parent=11 // pred_check
          %p193 = pneg %p105
        $region22: #{extended_mapping_a.1} parent=11 // pred_check_branch
          %195 = sbr.rel (%p193) target = $region24
        $region23: #{extended_mapping_a.1} parent=11 // pred_region
          %197 = vsyncadd [#allocation8], 0
          %s199 = sshll.u32 %s3, 4
          %s200 = int_to_ptr.hbm [resolvable:$true] %s199
          %s201 = sshll.u32 [#allocation7], 4
          %s202 = int_to_ptr.vmem [resolvable:$true] %s201
          %204 = dma.hbm_to_vmem [thread:$0]  %s200, 128, %s202, [#allocation8]
        $region24: #{extended_mapping_a.1} parent=11 // pred_fallthru
          _
        // Predicated region
        $region25: #{extended_mapping_a.1} parent=11 // pred_check
          %p205 = pneg %p126
        $region26: #{extended_mapping_a.1} parent=11 // pred_check_branch
          %207 = sbr.rel (%p205) target = $region28
        $region27: #{extended_mapping_a.1} parent=11 // pred_region
          _
        $region28: #{extended_mapping_a.1} parent=11 // pred_fallthru
          _
      $region12: #{extended_mapping_a.1} parent=5 // pred_fallthru
        _
      %p208 = scmp.lt.s32.totalorder %s16, 2
      // Predicated region
      $region29: #{extended_mapping_a.1} parent=5 // pred_check
        %p209 = pneg %p208
      $region30: #{extended_mapping_a.1} parent=5 // pred_check_branch
        %211 = sbr.rel (%p209) target = $region32
      $region31: #{extended_mapping_a.1} parent=5 // pred_region
        // Predicated region
        $region33: #{extended_mapping_a.1} parent=31 // pred_check
          %p212 = pneg %p36
        $region34: #{extended_mapping_a.1} parent=31 // pred_check_branch
          %214 = sbr.rel (%p212) target = $region36
        $region35: #{extended_mapping_a.1} parent=31 // pred_region
          %s215 = sand.u32 %s26, 1
          %s216 = scalar_lea.sflag [#allocation3], %s215
          %s217 = sand.u32 %s26, 1
          %s218 = smul.addr %s217, 8
          %s219 = scalar_lea.vmem [#allocation2], %s218
          %221 = vsyncadd %s216, 0
          %s222 = smul.addr %s16, 8
          %s223 = scalar_lea.hbm %s0, %s222
          %s225 = sshll.u32 %s223, 4
          %s226 = int_to_ptr.hbm [resolvable:$true] %s225
          %s227 = sshll.u32 %s219, 4
          %s228 = int_to_ptr.vmem [resolvable:$true] %s227
          %230 = dma.hbm_to_vmem [thread:$0]  %s226, 128, %s228, %s216
        $region36: #{extended_mapping_a.1} parent=31 // pred_fallthru
          _
      $region32: #{extended_mapping_a.1} parent=5 // pred_fallthru
        _
      %p231 = scmp.le.s32.totalorder 1, %s16
      %p232 = scmp.lt.s32.totalorder %s16, 3
      %p233 = pnand %p231, %p232
      %p234 = pneg %p233
      // Predicated region
      $region37: #{extended_mapping_a.1} parent=5 // pred_check
        _
      $region38: #{extended_mapping_a.1} parent=5 // pred_check_branch
        %236 = sbr.rel (%p233) target = $region40
      $region39: #{extended_mapping_a.1} parent=5 // pred_region
        %s237 = ssub.s32 %s16, 1
        %s238 = sand.u32 %s29, 1
        %s239 = scalar_lea.sflag [#allocation3], %s238
        %s240 = sand.u32 %s29, 1
        %s241 = smul.addr %s240, 8
        %s242 = scalar_lea.vmem [#allocation2], %s241
        // Predicated region
        $region41: #{extended_mapping_a.1} parent=39 // pred_check
          %p243 = pneg %p42
        $region42: #{extended_mapping_a.1} parent=39 // pred_check_branch
          %245 = sbr.rel (%p243) target = $region44
        $region43: #{extended_mapping_a.1} parent=39 // pred_region
          %247 = dma.done %s239, 128
        $region44: #{extended_mapping_a.1} parent=39 // pred_fallthru
          _
        // Predicated region
        $region45: #{extended_mapping_a.1} parent=39 // pred_check
          %p248 = pneg %p63
        $region46: #{extended_mapping_a.1} parent=39 // pred_check_branch
          %250 = sbr.rel (%p248) target = $region48
        $region47: #{extended_mapping_a.1} parent=39 // pred_region
          %252 = dma.done [#allocation5], 256
        $region48: #{extended_mapping_a.1} parent=39 // pred_fallthru
          _
        // Predicated region
        $region49: #{extended_mapping_a.1} parent=39 // pred_check
          %p253 = pneg %p84
        $region50: #{extended_mapping_a.1} parent=39 // pred_check_branch
          %255 = sbr.rel (%p253) target = $region52
        $region51: #{extended_mapping_a.1} parent=39 // pred_region
          %257 = dma.done [#allocation5], 16
        $region52: #{extended_mapping_a.1} parent=39 // pred_fallthru
          _
        // Predicated region
        $region53: #{extended_mapping_a.1} parent=39 // pred_check
          %p258 = pneg %p105
        $region54: #{extended_mapping_a.1} parent=39 // pred_check_branch
          %260 = sbr.rel (%p258) target = $region56
        $region55: #{extended_mapping_a.1} parent=39 // pred_region
          %262 = dma.done [#allocation8], 128
        $region56: #{extended_mapping_a.1} parent=39 // pred_fallthru
          _
        %s263 = sand.u32 %s29, 1
        %s264 = scalar_lea.sflag [#allocation3], %s263
        %s265 = sand.u32 %s29, 1
        %s266 = smul.addr %s265, 8
        %s267 = scalar_lea.vmem [#allocation2], %s266
        %p268 = pneg %p42
        %p269 = pneg %p39
        %p270 = pneg %p63
        %p271 = pneg %p60
        %p272 = pneg %p84
        %p273 = pneg %p81
        %p274 = pneg %p105
        %p275 = pneg %p102
        %p276 = pneg %p126
        %p277 = pneg %p123
        %p278 = pneg %p152
        %p279 = pneg %p149
        %p280 = scmp.lt.s32.totalorder %s21, 1
        %s281 = scalar_select %p280, %s21, 1
        %s282 = smul.addr %s281, 2
        %s283 = smul.addr %s282, 8
        %s284 = scalar_lea.vmem %s5, %s283
        %p285 = scmp.lt.s32.totalorder %s21, 1
        %s286 = scalar_select %p285, %s21, 1
        %s287 = smul.addr %s286, 2
        %s288 = smul.addr %s287, 8
        %s289 = scalar_lea.vmem %s5, %s288
        %v290 = vld [vmem:[%s242] sm:$0xff]
        %v291 = vld [vmem:[#allocation4] sm:$0xff]
        %v292 = vld [vmem:[#allocation4 + $0x8] sm:$0x3]
        %vm293 = vcmask 80896
        %v295 = vsel %vm293, %v290, 0
        %vm297 = vcmask 1041408
        %v299 = vsel %vm297, %v292, 0
        %301 = vmatpush.msra.mxu0 0.0
        %302 = vmatpush.msra.mxu0 0.0
        %303 = vmatpush.msra.mxu0 0.0
        %304 = vmatpush.msra.mxu0 0.0
        %305 = vmatpush.msra.mxu0 0.0
        %306 = vmatpush.msra.mxu0 0.0
        %307 = vmatpush.msra.mxu0 0.0
        %308 = vmatpush.msra.mxu0 0.0
        %309 = vmatpush.msra.mxu0 0.0
        %310 = vmatpush.msra.mxu0 0.0
        %311 = vmatpush.msra.mxu0 0.0
        %312 = vmatpush.msra.mxu0 0.0
        %313 = vmatpush.msra.mxu0 0.0
        %314 = vmatpush.msra.mxu0 0.0
        %315 = vmatpush.msra.mxu0 %v299
        %316 = vmatpush.msra.mxu0 %v291
        %317 = vmatmul.f32.gmra.mxu0 %v295
        %v318 = vpop.f32.mrf.mxu0
        %v319 = vadd.f32 0.0, %v318
        %320 = vdwg.mxu0
        %v321 = vld [vmem:[#allocation6] sm:$0x1]
        %v323 = vperm.slane %v321, 0
        %v325 = vadd.f32 %v319, %v323
        %v326 = vld [vmem:[#allocation7] sm:$0xff]
        %v327 = vmul.f32 %v325, %v326
        %vm328 = vcmask 261120
        %329 = vst.msk [vmem:[%s289] sm:$0xff] %vm328, %v327
        %v330 = vld [vmem:[%s4] sm:$0xf]
        %vm331 = vcmask 257024
        %332 = vst.msk [vmem:[%s289 + $0x8] sm:$0xf] %vm331, %v330
        %p333 = scmp.lt.s32.totalorder %s21, 1
        %s334 = scalar_select %p333, %s21, 1
        %s335 = smul.addr %s334, 2
        %s336 = smul.addr %s335, 8
        %s337 = scalar_lea.vmem %s5, %s336
        // Predicated region
        $region57: #{extended_mapping_a.1} parent=39 // pred_check
          %p338 = pneg %p149
        $region58: #{extended_mapping_a.1} parent=39 // pred_check_branch
          %340 = sbr.rel (%p338) target = $region60
        $region59: #{extended_mapping_a.1} parent=39 // pred_region
          _
        $region60: #{extended_mapping_a.1} parent=39 // pred_fallthru
          _
      $region40: #{extended_mapping_a.1} parent=5 // pred_fallthru
        _
      %p341 = scmp.le.s32.totalorder 2, %s16
      // Predicated region
      $region61: #{extended_mapping_a.1} parent=5 // pred_check
        %p342 = pneg %p341
      $region62: #{extended_mapping_a.1} parent=5 // pred_check_branch
        %344 = sbr.rel (%p342) target = $region64
      $region63: #{extended_mapping_a.1} parent=5 // pred_region
        %s345 = ssub.s32 %s16, 2
        // Predicated region
        $region65: #{extended_mapping_a.1} parent=63 // pred_check
          %p346 = pneg %p155
        $region66: #{extended_mapping_a.1} parent=63 // pred_check_branch
          %348 = sbr.rel (%p346) target = $region68
        $region67: #{extended_mapping_a.1} parent=63 // pred_region
          %p349 = scmp.lt.s32.totalorder %s22, 1
          %s350 = scalar_select %p349, %s22, 1
          %s351 = smul.addr %s350, 2
          %s352 = smul.addr %s351, 8
          %s353 = scalar_lea.vmem %s5, %s352
        $region68: #{extended_mapping_a.1} parent=63 // pred_fallthru
          _
      $region64: #{extended_mapping_a.1} parent=5 // pred_fallthru
        _
    $region6: #{extended_mapping_a.1} parent=1 // loop_footer
      %s20 = sadd.s32 1, %s16
    $region7: #{extended_mapping_a.1} parent=1 // loop_footer_branch
      %15 = sbr.rel target = $region3
    $region8: #{extended_mapping_a.1} parent=1 // loop_exit
      _
    %354 = vsyncpa [#allocation3], 1
    %s355 = scalar_lea.sflag [#allocation3], 1
    %356 = vsyncpa %s355, 1
    %357 = vsyncpa [#allocation5], 1
    %358 = vsyncpa [#allocation8], 1

</llo_original>
